<compile_context>
chip_gen: v6e
topology: v6e:2x2x1
jax: 0.10.0
libtpu: 0.0.40
codegen_flags: <defaults>
</compile_context>

<pallas_src>
import jax
import jax.numpy as jnp
from jax.experimental import pallas as pl
from jax.experimental.pallas import tpu as pltpu

EPS = 1e-5  # nn.InstanceNorm1d default

_CompilerParams = getattr(pltpu, "CompilerParams", None) or getattr(pltpu, "TPUCompilerParams")


# --------------------------------------------------------------------------- #
# Kernels
# --------------------------------------------------------------------------- #
def _block_kernel(x1_ref, x2_ref, w_ref, b_ref, o_ref):
    """Full-sequence block: (bt, S, te). Stats over axis=1 per (row, channel)."""
    x = x1_ref[...].astype(jnp.float32) + x2_ref[...].astype(jnp.float32)
    inv_n = jnp.float32(1.0 / x.shape[1])
    mean = jnp.sum(x, axis=1, keepdims=True) * inv_n              # (bt, 1, te)
    centered = x - mean
    # Two-pass (centered) biased variance: matches PyTorch numerics; extra VPU
    # work is free at this kernel's HBM-bound operating point.
    var = jnp.sum(centered * centered, axis=1, keepdims=True) * inv_n
    inv = jax.lax.rsqrt(var + jnp.float32(EPS))
    o_ref[...] = (centered * (inv * w_ref[...]) + b_ref[...]).astype(o_ref.dtype)


def _make_s_tiled_kernel(true_seq_len):
    """Two-pass kernel for sequences too long to keep VMEM-resident.

    Grid = (E/te, B, 2, S/ts); pass 0 accumulates sum / sum-of-squares into
    VMEM scratch, pass 1 normalizes and writes.  `true_seq_len` (pre-padding)
    is baked in so zero-padded sequence rows do not perturb the statistics.
    """
    inv_n = 1.0 / float(true_seq_len)

    def kernel(x1_ref, x2_ref, w_ref, b_ref, o_ref, sum_ref, sumsq_ref):
        p = pl.program_id(2)   # 0 = accumulate stats, 1 = normalize
        s = pl.program_id(3)

        @pl.when((p == 0) & (s == 0))
        def _init():
            sum_ref[...] = jnp.zeros_like(sum_ref)
            sumsq_ref[...] = jnp.zeros_like(sumsq_ref)

        x = x1_ref[...].astype(jnp.float32) + x2_ref[...].astype(jnp.float32)

        @pl.when(p == 0)
        def _accumulate():
            sum_ref[...] += jnp.sum(x, axis=1, keepdims=True)
            sumsq_ref[...] += jnp.sum(x * x, axis=1, keepdims=True)

        @pl.when(p == 1)
        def _normalize():
            mean = sum_ref[...] * jnp.float32(inv_n)
            var = jnp.maximum(sumsq_ref[...] * jnp.float32(inv_n) - mean * mean, 0.0)
            inv = jax.lax.rsqrt(var + jnp.float32(EPS))
            o_ref[...] = ((x - mean) * (inv * w_ref[...]) + b_ref[...]).astype(o_ref.dtype)

    return kernel


# --------------------------------------------------------------------------- #
# Tiling helpers
# --------------------------------------------------------------------------- #
def _vmem_info(budget_override=None):
    """(per-step budget bytes, physical VMEM capacity bytes), generation-aware."""
    try:
        cap = int(pltpu.get_tpu_info().vmem_capacity_bytes)
    except Exception:
        cap = 64 * 1024 * 1024          # conservative (v7x-sized) fallback
    if budget_override is not None:
        budget = int(budget_override)
    else:
        budget = (cap * 9) // 16        # ~72 MiB on 128 MiB parts, ~36 MiB on v7x
    return budget, cap


def _vmem_limit(step_bytes, cap):
    # Never request the full physical VMEM (Mosaic needs scratch headroom):
    # <= 96 MiB on 128 MiB parts, <= 48 MiB on v7x.
    return int(min((cap * 3) // 4, max(32 * 1024 * 1024, 2 * step_bytes)))


def _divisors_desc(n, mult):
    """Divisors of n that are multiples of `mult`, descending."""
    return [d for d in range(n, 0, -1) if n % d == 0 and d % mult == 0]


def _largest_divisor_le(n, mult, upper):
    """Largest divisor of n that is a multiple of `mult` and <= upper (or None)."""
    for d in range(min(n, upper), 0, -1):
        if n % d == 0 and d % mult == 0:
            return d
    return None


# --------------------------------------------------------------------------- #
# pallas_call wrappers
# --------------------------------------------------------------------------- #
def _call_full_seq(x1, x2, w3, b3, bt, te, bytes_per_elem, cap, extra_buffered):
    B, S, E_pad = x1.shape
    grid = (E_pad // te, B // bt)           # channels outermost: gamma/beta stay resident
    x_map = lambda e, b: (b, 0, e)
    p_map = lambda e, b: (0, 0, e)

    def in_spec():
        # Optional triple-buffering for tiny blocks on 128 MiB parts (guarded).
        if extra_buffered and hasattr(pl, "Buffered"):
            try:
                return pl.BlockSpec((bt, S, te), x_map, pipeline_mode=pl.Buffered(3))
            except TypeError:
                pass
        return pl.BlockSpec((bt, S, te), x_map)

    step_bytes = bt * S * te * bytes_per_elem + 4 * te * 8
    return pl.pallas_call(
        _block_kernel,
        out_shape=jax.ShapeDtypeStruct((B, S, E_pad), x1.dtype),
        grid=grid,
        in_specs=[in_spec(), in_spec(),
                  pl.BlockSpec((1, 1, te), p_map),
                  pl.BlockSpec((1, 1, te), p_map)],
        out_specs=pl.BlockSpec((bt, S, te), x_map),
        compiler_params=_CompilerParams(
            dimension_semantics=("parallel", "parallel"),
            vmem_limit_bytes=_vmem_limit(step_bytes, cap),
        ),
    )(x1, x2, w3, b3)


def _call_s_tiled(x1, x2, w3, b3, ts, te, true_seq_len, bytes_per_elem, cap):
    B, S_pad, E_pad = x1.shape
    grid = (E_pad // te, B, 2, S_pad // ts)
    x_map = lambda e, b, p, s: (b, s, e)
    # During the stats pass (p == 0) the output block index is pinned to
    # (b, 0, e): nothing is written and nothing is copied back to HBM until
    # the normalize pass revisits and overwrites it.
    o_map = lambda e, b, p, s: (b, s * p, e)
    p_map = lambda e, b, p, s: (0, 0, e)

    step_bytes = ts * te * bytes_per_elem + 4 * te * 8
    return pl.pallas_call(
        _make_s_tiled_kernel(true_seq_len),
        out_shape=jax.ShapeDtypeStruct((B, S_pad, E_pad), x1.dtype),
        grid=grid,
        in_specs=[pl.BlockSpec((1, ts, te), x_map),
                  pl.BlockSpec((1, ts, te), x_map),
                  pl.BlockSpec((1, 1, te), p_map),
                  pl.BlockSpec((1, 1, te), p_map)],
        out_specs=pl.BlockSpec((1, ts, te), o_map),
        scratch_shapes=[pltpu.VMEM((1, 1, te), jnp.float32),
                        pltpu.VMEM((1, 1, te), jnp.float32)],
        compiler_params=_CompilerParams(
            dimension_semantics=("parallel", "parallel", "arbitrary", "arbitrary"),
            vmem_limit_bytes=_vmem_limit(step_bytes, cap),
        ),
    )(x1, x2, w3, b3)


# --------------------------------------------------------------------------- #
# Public wrapper
# --------------------------------------------------------------------------- #
def add_and_instance_norm(input1, input2, weight, bias, *, vmem_budget_bytes=None):
    """input1, input2: (B, S, E); weight, bias: (E,). Returns (B, S, E)."""
    assert input1.shape == input2.shape and input1.ndim == 3
    B, S, E = input1.shape
    assert weight.shape == (E,) and bias.shape == (E,)
    out_dtype = input1.dtype

    # Sub-64-channel shapes would run at <50% lane occupancy even after
    # padding; plain XLA is the better tool there.
    if E < 64:
        return _reference(input1, input2, weight, bias)

    # Lane-dense channel padding (padded channels are independent instances
    # and are sliced off afterwards; zeros normalize to zeros).
    E_pad = -(-E // 128) * 128
    if E_pad != E:
        cpad = E_pad - E
        input1 = jnp.pad(input1, ((0, 0), (0, 0), (0, cpad)))
        input2 = jnp.pad(input2, ((0, 0), (0, 0), (0, cpad)))
        weight = jnp.pad(weight, (0, cpad), constant_values=1.0)
        bias = jnp.pad(bias, (0, cpad))

    # Affine params: cast once in the wrapper, shaped (1, 1, E) to broadcast.
    w3 = weight.astype(jnp.float32).reshape(1, 1, E_pad)
    b3 = bias.astype(jnp.float32).reshape(1, 1, E_pad)

    in_bytes = input1.dtype.itemsize
    # Per-element per-step footprint: 2 double-buffered inputs, 1 double-
    # buffered output, ~3 live f32 block temporaries inside the body.
    bytes_per_elem = 2 * 2 * in_bytes + 2 * in_bytes + 3 * 4
    budget, cap = _vmem_info(vmem_budget_bytes)
    max_block_elems = max(8 * 128, budget // bytes_per_elem)

    # --- Preferred path: whole sequence resident per block. ----------------- #
    te = None
    for cand in _divisors_desc(E_pad, 128):          # widest 128-multiple first
        if S * cand <= max_block_elems:
            te = cand
            break

    if te is not None:
        bt = 1
        for cand in _divisors_desc(B, 1):            # fold batch rows into the block
            if cand * S * te <= max_block_elems:
                bt = cand
                break
        n_steps = (E_pad // te) * (B // bt)
        extra_buffered = (cap >= 100 * 1024 * 1024
                          and bt * S * te * in_bytes <= (1 << 20)
                          and n_steps >= 4)
        try:
            out = _call_full_seq(input1, input2, w3, b3, bt, te,
                                 bytes_per_elem, cap, extra_buffered)
        except Exception:
            if not extra_buffered:
                raise
            out = _call_full_seq(input1, input2, w3, b3, bt, te,
                                 bytes_per_elem, cap, False)
    else:
        # --- Long-sequence path: S-tiled two-pass kernel. ------------------- #
        S_pad = -(-S // 8) * 8
        if S_pad != S:
            spad = S_pad - S     # zero rows do not perturb sum / sum-of-squares
            input1 = jnp.pad(input1, ((0, 0), (0, spad), (0, 0)))
            input2 = jnp.pad(input2, ((0, 0), (0, spad), (0, 0)))
        best = None
        for te_c in _divisors_desc(E_pad, 128):
            upper = max_block_elems // te_c
            if upper < 8:
                continue
            ts_c = _largest_divisor_le(S_pad, 8, upper)
            if ts_c is None:
                continue
            key = (te_c * ts_c, te_c)                # biggest block, then widest DMA run
            if best is None or key > best[0]:
                best = (key, te_c, ts_c)
        assert best is not None, "VMEM budget too small even for an (8, 128) tile"
        _, te, ts = best
        out = _call_s_tiled(input1, input2, w3, b3, ts, te, S, bytes_per_elem, cap)

    if out.shape[1] != S or out.shape[2] != E:
        out = out[:, :S, :E]
    return out.astype(out_dtype)


# --------------------------------------------------------------------------- #
# Pure-JAX reference (also the tiny-E fallback)
# --------------------------------------------------------------------------- #
def _reference(input1, input2, weight, bias):
    added = (input1 + input2).astype(jnp.float32)
    t = jnp.transpose(added, (0, 2, 1))                         # (B, E, S)
    mean = jnp.mean(t, axis=-1, keepdims=True)
    var = jnp.mean((t - mean) ** 2, axis=-1, keepdims=True)     # biased
    n = (t - mean) / jnp.sqrt(var + EPS)
    n = (n * weight.astype(jnp.float32)[None, :, None]
         + bias.astype(jnp.float32)[None, :, None])
    return jnp.transpose(n, (0, 2, 1)).astype(input1.dtype)


def _run_case(key, B, S, E, **kwargs):
    k1, k2, k3, k4 = jax.random.split(key, 4)
    input1 = jax.random.normal(k1, (B, S, E), dtype=jnp.float32)
    input2 = jax.random.normal(k2, (B, S, E), dtype=jnp.float32)
    weight = 1.0 + 0.1 * jax.random.normal(k3, (E,), dtype=jnp.float32)
    bias = 0.1 * jax.random.normal(k4, (E,), dtype=jnp.float32)

    out = jax.block_until_ready(add_and_instance_norm(input1, input2, weight, bias, **kwargs))
    ref = _reference(input1, input2, weight, bias)
    assert out.shape == (B, S, E), f"bad shape {out.shape} for ({B},{S},{E})"
    assert jnp.allclose(out, ref, atol=2e-4, rtol=1e-5), f"mismatch vs reference ({B},{S},{E})"


if __name__ == "__main__":
    keys = jax.random.split(jax.random.PRNGKey(0), 5)
    # Lane-dense main path (typical TSP embedding dim).
    _run_case(keys[0], B=2, S=16, E=128)
    # Batch-folded blocks at a wider embedding.
    _run_case(keys[1], B=4, S=64, E=256)
    # E not a multiple of 128 -> padded to lane-dense width, then sliced.
    _run_case(keys[2], B=2, S=40, E=96)
    # Multi-step pipelined grid (forced small budget keeps blocks modest).
    _run_case(keys[3], B=4, S=128, E=512, vmem_budget_bytes=2 * 1024 * 1024)
    # Long-sequence escape hatch: tiny forced budget triggers the S-tiled
    # two-pass (stats + normalize) kernel at a small test shape.
    _run_case(keys[4], B=2, S=64, E=128, vmem_budget_bytes=256 * 1024)
    print("KERNEL_OK")
</pallas_src>

<mosaic_0001>
module attributes {stable_mosaic.version = 11 : i64} {
  func.func @_block_kernel(%arg0: i32, %arg1: i32, %arg2: memref<2x16x128xf32, #tpu.memory_space<vmem>>, %arg3: memref<2x16x128xf32, #tpu.memory_space<vmem>>, %arg4: memref<1x1x128xf32, #tpu.memory_space<vmem>>, %arg5: memref<1x1x128xf32, #tpu.memory_space<vmem>>, %arg6: memref<2x16x128xf32, #tpu.memory_space<vmem>>) attributes {dimension_semantics = [#tpu.dimension_semantics<parallel>, #tpu.dimension_semantics<parallel>], iteration_bounds = array<i64: 1, 1>, scalar_prefetch = 0 : i64, scratch_operands = 0 : i64, tpu.core_type = #tpu.core_type<tc>, window_params = [{transform_indices = @transform_0, window_bounds = array<i64: 2, 16, 128>}, {transform_indices = @transform_1, window_bounds = array<i64: 2, 16, 128>}, {transform_indices = @transform_2, window_bounds = array<i64: 1, 1, 128>}, {transform_indices = @transform_3, window_bounds = array<i64: 1, 1, 128>}, {transform_indices = @transform_4, window_bounds = array<i64: 2, 16, 128>}]} {
    %c0 = arith.constant 0 : index
    %c0_0 = arith.constant 0 : index
    %c0_1 = arith.constant 0 : index
    %0 = vector.load %arg2[%c0, %c0_0, %c0_1] : memref<2x16x128xf32, #tpu.memory_space<vmem>>, vector<2x16x128xf32>
    %c0_2 = arith.constant 0 : index
    %c0_3 = arith.constant 0 : index
    %c0_4 = arith.constant 0 : index
    %1 = vector.load %arg3[%c0_2, %c0_3, %c0_4] : memref<2x16x128xf32, #tpu.memory_space<vmem>>, vector<2x16x128xf32>
    %2 = arith.addf %0, %1 : vector<2x16x128xf32>
    %cst = arith.constant dense<0.000000e+00> : vector<2x128xf32>
    %3 = vector.multi_reduction <add>, %2, %cst [1] : vector<2x16x128xf32> to vector<2x128xf32>
    %4 = vector.shape_cast %3 : vector<2x128xf32> to vector<2x1x128xf32>
    %cst_5 = arith.constant 6.250000e-02 : f32
    %5 = vector.broadcast %cst_5 : f32 to vector<2x1x128xf32>
    %6 = arith.mulf %4, %5 : vector<2x1x128xf32>
    %7 = vector.broadcast %6 : vector<2x1x128xf32> to vector<2x16x128xf32>
    %8 = arith.subf %2, %7 : vector<2x16x128xf32>
    %9 = arith.mulf %8, %8 : vector<2x16x128xf32>
    %cst_6 = arith.constant dense<0.000000e+00> : vector<2x128xf32>
    %10 = vector.multi_reduction <add>, %9, %cst_6 [1] : vector<2x16x128xf32> to vector<2x128xf32>
    %11 = vector.shape_cast %10 : vector<2x128xf32> to vector<2x1x128xf32>
    %cst_7 = arith.constant 6.250000e-02 : f32
    %12 = vector.broadcast %cst_7 : f32 to vector<2x1x128xf32>
    %13 = arith.mulf %11, %12 : vector<2x1x128xf32>
    %cst_8 = arith.constant 9.99999974E-6 : f32
    %14 = vector.broadcast %cst_8 : f32 to vector<2x1x128xf32>
    %15 = arith.addf %13, %14 : vector<2x1x128xf32>
    %16 = math.rsqrt %15 : vector<2x1x128xf32>
    %c0_9 = arith.constant 0 : index
    %c0_10 = arith.constant 0 : index
    %c0_11 = arith.constant 0 : index
    %17 = vector.load %arg4[%c0_9, %c0_10, %c0_11] : memref<1x1x128xf32, #tpu.memory_space<vmem>>, vector<1x1x128xf32>
    %18 = vector.broadcast %17 : vector<1x1x128xf32> to vector<2x1x128xf32>
    %19 = arith.mulf %16, %18 : vector<2x1x128xf32>
    %20 = vector.broadcast %19 : vector<2x1x128xf32> to vector<2x16x128xf32>
    %21 = arith.mulf %8, %20 : vector<2x16x128xf32>
    %c0_12 = arith.constant 0 : index
    %c0_13 = arith.constant 0 : index
    %c0_14 = arith.constant 0 : index
    %22 = vector.load %arg5[%c0_12, %c0_13, %c0_14] : memref<1x1x128xf32, #tpu.memory_space<vmem>>, vector<1x1x128xf32>
    %23 = vector.broadcast %22 : vector<1x1x128xf32> to vector<2x16x128xf32>
    %24 = arith.addf %21, %23 : vector<2x16x128xf32>
    %c0_15 = arith.constant 0 : index
    %c0_16 = arith.constant 0 : index
    %c0_17 = arith.constant 0 : index
    %25 = vector.load %arg6[%c0_15, %c0_16, %c0_17] : memref<2x16x128xf32, #tpu.memory_space<vmem>>, vector<2x16x128xf32>
    tpu.vector_store %arg6[%c0_15, %c0_16, %c0_17], %24 {strides = array<i32>} : memref<2x16x128xf32, #tpu.memory_space<vmem>>, vector<2x16x128xf32>,
    return
  }
  func.func @transform_0(%arg0: i32, %arg1: i32) -> (i32, i32, i32) {
    %c0_i32 = arith.constant 0 : i32
    %c0_i32_0 = arith.constant 0 : i32
    return %arg1, %c0_i32, %arg0 : i32, i32, i32
  }
  func.func @transform_1(%arg0: i32, %arg1: i32) -> (i32, i32, i32) {
    %c0_i32 = arith.constant 0 : i32
    %c0_i32_0 = arith.constant 0 : i32
    return %arg1, %c0_i32, %arg0 : i32, i32, i32
  }
  func.func @transform_2(%arg0: i32, %arg1: i32) -> (i32, i32, i32) {
    %c0_i32 = arith.constant 0 : i32
    %c0_i32_0 = arith.constant 0 : i32
    %c0_i32_1 = arith.constant 0 : i32
    return %c0_i32, %c0_i32_0, %arg0 : i32, i32, i32
  }
  func.func @transform_3(%arg0: i32, %arg1: i32) -> (i32, i32, i32) {
    %c0_i32 = arith.constant 0 : i32
    %c0_i32_0 = arith.constant 0 : i32
    %c0_i32_1 = arith.constant 0 : i32
    return %c0_i32, %c0_i32_0, %arg0 : i32, i32, i32
  }
  func.func @transform_4(%arg0: i32, %arg1: i32) -> (i32, i32, i32) {
    %c0_i32 = arith.constant 0 : i32
    %c0_i32_0 = arith.constant 0 : i32
    return %arg1, %c0_i32, %arg0 : i32, i32, i32
  }
}

</mosaic_0001>

<llo_original>
// kernel: tpu_custom_call.1
$region0: #{tpu_custom_call.1}
  #allocation0 [shape = 'u32[]', space=smem, size = 0x4, offset = 0x4, fixed_abs, tag = 'smem constant byte address 0x4 - core index']
  #allocation1 [shape = 'u32[144,128]{1,0:T(1,128)}', space=vmem, size = 0x12000, scoped, tag = 'internal scratch']
  %s0 = inlined_call_operand.hbm [shape: f32[2,16,128], index: 0, kind: input, shape index: {}]
  %s1 = inlined_call_operand.hbm [shape: f32[2,16,128], index: 1, kind: input, shape index: {}]
  %s2 = inlined_call_operand.vmem [shape: f32[1,1,128], index: 2, kind: input, shape index: {}]
  %s3 = inlined_call_operand.vmem [shape: f32[1,1,128], index: 3, kind: input, shape index: {}]
  %s4 = inlined_call_operand.hbm [shape: f32[2,16,128], index: 4, kind: output, shape index: {}]
  %s5 = sld [smem:[#allocation0]]
  $region34: #{tpu_custom_call.1} parent=0
    _
  %s7 = ssub.s32 1, %s5
  %s8 = scalar_select 0, %s7, %s5
  $region1: #{tpu_custom_call.1} parent=0
    #allocation2 [shape = 'u8[16384]{0}', space=vmem, size = 0x4000, scoped, tag = 'input window, operand 0, single buffered']
    #allocation3 [shape = 's32[1]{0}', space=sflag, size = 0x4, scoped, tag = 'scoped memory for tpu_custom_call.1']
    #allocation4 [shape = 's32[1]{0}', space=sflag, size = 0x4, scoped, tag = 'scoped memory for tpu_custom_call.1']
    #allocation5 [shape = 'u8[16384]{0}', space=vmem, size = 0x4000, scoped, tag = 'input window, operand 1, single buffered']
    #allocation6 [shape = 's32[1]{0}', space=sflag, size = 0x4, scoped, tag = 'scoped memory for tpu_custom_call.1']
    #allocation7 [shape = 'u8[16384]{0}', space=vmem, size = 0x4000, scoped, tag = 'output window, operand 0, single buffered']
    %9 = vsyncpa [#allocation3], 0
    %10 = vsyncpa [#allocation6], 0
    %11 = vsyncpa [#allocation4], 0
    // Predicated region
    $region2: #{tpu_custom_call.1} parent=1 // pred_check
      _
    $region3: #{tpu_custom_call.1} parent=1 // pred_check_branch
      %13 = sbr.rel (0) target = $region5
    $region4: #{tpu_custom_call.1} parent=1 // pred_region
      %s15 = ssub.s32 512, 512
      %16 = vsyncadd [#allocation3], %s15
      %s17 = sshll.u32 [#allocation2], 4
      %s18 = int_to_ptr.vmem [resolvable:$true] %s17
      %23 = dma.hbm_to_vmem [thread:$0]  %s0, 512, %s18, [#allocation3], 128, 128, 8
    $region5: #{tpu_custom_call.1} parent=1 // pred_fallthru
      _
    // Predicated region
    $region6: #{tpu_custom_call.1} parent=1 // pred_check
      _
    $region7: #{tpu_custom_call.1} parent=1 // pred_check_branch
      %25 = sbr.rel (0) target = $region9
    $region8: #{tpu_custom_call.1} parent=1 // pred_region
      %s27 = ssub.s32 512, 512
      %28 = vsyncadd [#allocation6], %s27
      %s29 = sshll.u32 [#allocation5], 4
      %s30 = int_to_ptr.vmem [resolvable:$true] %s29
      %35 = dma.hbm_to_vmem [thread:$0]  %s1, 512, %s30, [#allocation6], 128, 128, 8
    $region9: #{tpu_custom_call.1} parent=1 // pred_fallthru
      _
    // Predicated region
    $region10: #{tpu_custom_call.1} parent=1 // pred_check
      _
    $region11: #{tpu_custom_call.1} parent=1 // pred_check_branch
      %37 = sbr.rel (0) target = $region13
    $region12: #{tpu_custom_call.1} parent=1 // pred_region
      _
    $region13: #{tpu_custom_call.1} parent=1 // pred_fallthru
      _
    // Predicated region
    $region14: #{tpu_custom_call.1} parent=1 // pred_check
      _
    $region15: #{tpu_custom_call.1} parent=1 // pred_check_branch
      %39 = sbr.rel (0) target = $region17
    $region16: #{tpu_custom_call.1} parent=1 // pred_region
      _
    $region17: #{tpu_custom_call.1} parent=1 // pred_fallthru
      _
    // Predicated region
    $region18: #{tpu_custom_call.1} parent=1 // pred_check
      _
    $region19: #{tpu_custom_call.1} parent=1 // pred_check_branch
      %41 = sbr.rel (0) target = $region21
    $region20: #{tpu_custom_call.1} parent=1 // pred_region
      %42 = dma.done [#allocation3], 512
    $region21: #{tpu_custom_call.1} parent=1 // pred_fallthru
      _
    // Predicated region
    $region22: #{tpu_custom_call.1} parent=1 // pred_check
      _
    $region23: #{tpu_custom_call.1} parent=1 // pred_check_branch
      %44 = sbr.rel (0) target = $region25
    $region24: #{tpu_custom_call.1} parent=1 // pred_region
      %45 = dma.done [#allocation6], 512
    $region25: #{tpu_custom_call.1} parent=1 // pred_fallthru
      _
    %v46 = vld [vmem:[#allocation2] sm:$0xff]
    %v47 = vld [vmem:[#allocation2 + $0x8] sm:$0xff]
    %v48 = vld [vmem:[#allocation2 + $0x10] sm:$0xff]
    %v49 = vld [vmem:[#allocation2 + $0x18] sm:$0xff]
    %v50 = vld [vmem:[#allocation5] sm:$0xff]
    %v51 = vld [vmem:[#allocation5 + $0x8] sm:$0xff]
    %v52 = vld [vmem:[#allocation5 + $0x10] sm:$0xff]
    %v53 = vld [vmem:[#allocation5 + $0x18] sm:$0xff]
    %v54 = vadd.f32 %v46, %v50
    %v55 = vadd.f32 %v47, %v51
    %v56 = vadd.f32 %v48, %v52
    %v57 = vadd.f32 %v49, %v53
    %v58 = vadd.f32 %v54, %v55
    %v59 = vrot.slane %v58, 4
    %v60 = vadd.f32 %v58, %v59
    %v61 = vrot.slane %v60, 2
    %v62 = vadd.f32 %v60, %v61
    %v63 = vrot.slane %v62, 1
    %v64 = vadd.f32 %v62, %v63
    %v65 = vadd.f32 %v56, %v57
    %v66 = vrot.slane %v65, 4
    %v67 = vadd.f32 %v65, %v66
    %v68 = vrot.slane %v67, 2
    %v69 = vadd.f32 %v67, %v68
    %v70 = vrot.slane %v69, 1
    %v71 = vadd.f32 %v69, %v70
    %v72 = vmul.f32 %v64, 0.0625
    %v73 = vmul.f32 %v71, 0.0625
    %v74 = vsub.f32 %v54, %v72
    %v75 = vsub.f32 %v55, %v72
    %v76 = vsub.f32 %v56, %v73
    %v77 = vsub.f32 %v57, %v73
    %v78 = vmul.f32 %v74, %v74
    %v79 = vmul.f32 %v75, %v75
    %v80 = vmul.f32 %v76, %v76
    %v81 = vmul.f32 %v77, %v77
    %v82 = vadd.f32 %v78, %v79
    %v83 = vrot.slane %v82, 4
    %v84 = vadd.f32 %v82, %v83
    %v85 = vrot.slane %v84, 2
    %v86 = vadd.f32 %v84, %v85
    %v87 = vrot.slane %v86, 1
    %v88 = vadd.f32 %v86, %v87
    %v89 = vadd.f32 %v80, %v81
    %v90 = vrot.slane %v89, 4
    %v91 = vadd.f32 %v89, %v90
    %v92 = vrot.slane %v91, 2
    %v93 = vadd.f32 %v91, %v92
    %v94 = vrot.slane %v93, 1
    %v95 = vadd.f32 %v93, %v94
    %v96 = vmul.f32 %v88, 0.0625
    %v97 = vmul.f32 %v95, 0.0625
    %v98 = vadd.f32 %v96, 1e-05
    %v99 = vadd.f32 %v97, 1e-05
    %v100 = vrsqrt.pop %v98
    %v101 = vrsqrt.pop %v99
    %v102 = vld [vmem:[%s2] sm:$0x1]
    %v103 = vmul.f32 %v100, %v102
    %v104 = vmul.f32 %v101, %v102
    %v105 = vlaneseq
    %v106 = vshrl.u32 %v105, 7
    %v107 = vsub.s32 0, %v106
    %v108 = vrot.slane %v103, %v107
    %v109 = vlaneseq
    %v110 = vshrl.u32 %v109, 7
    %v111 = vsub.s32 0, %v110
    %v112 = vrot.slane %v104, %v111
    %v113 = vmul.f32 %v74, %v108
    %v114 = vmul.f32 %v75, %v108
    %v115 = vmul.f32 %v76, %v112
    %v116 = vmul.f32 %v77, %v112
    %v117 = vld [vmem:[%s3] sm:$0x1]
    %v119 = vlaneseq
    %v120 = vshrl.u32 %v119, 7
    %v121 = vsub.s32 0, %v120
    %v122 = vrot.slane %v117, %v121
    %v124 = vadd.f32 %v113, %v122
    %v125 = vadd.f32 %v114, %v122
    %v126 = vadd.f32 %v115, %v122
    %v127 = vadd.f32 %v116, %v122
    %128 = vst [vmem:[#allocation7] sm:$0xff] %v124
    %129 = vst [vmem:[#allocation7 + $0x8] sm:$0xff] %v125
    %130 = vst [vmem:[#allocation7 + $0x10] sm:$0xff] %v126
    %131 = vst [vmem:[#allocation7 + $0x18] sm:$0xff] %v127
    // Predicated region
    $region26: #{tpu_custom_call.1} parent=1 // pred_check
      _
    $region27: #{tpu_custom_call.1} parent=1 // pred_check_branch
      %133 = sbr.rel (0) target = $region29
    $region28: #{tpu_custom_call.1} parent=1 // pred_region
      %s135 = ssub.s32 512, 512
      %136 = vsyncadd [#allocation4], %s135
      %s137 = sshll.u32 [#allocation7], 4
      %s138 = int_to_ptr.vmem [resolvable:$true] %s137
      %143 = dma.vmem_to_hbm [thread:$0]  %s138, 512, %s4, [#allocation4], 128, 128, 8
    $region29: #{tpu_custom_call.1} parent=1 // pred_fallthru
      _
    // Predicated region
    $region30: #{tpu_custom_call.1} parent=1 // pred_check
      _
    $region31: #{tpu_custom_call.1} parent=1 // pred_check_branch
      %145 = sbr.rel (0) target = $region33
    $region32: #{tpu_custom_call.1} parent=1 // pred_region
      %146 = dma.done [#allocation4], 512
    $region33: #{tpu_custom_call.1} parent=1 // pred_fallthru
      _
    %147 = vsyncpa [#allocation3], 1
    %148 = vsyncpa [#allocation6], 1
    %149 = vsyncpa [#allocation4], 1

</llo_original>
